<compile_context>
chip_gen: v6e
topology: v6e:2x2x1
jax: 0.10.0
libtpu: 0.0.40
codegen_flags: <defaults>
</compile_context>

<pallas_src>
import functools

import jax
import jax.numpy as jnp
from jax.experimental import pallas as pl
from jax.experimental.pallas import tpu as pltpu


def _softmax_last(s):
    """Numerically-stable softmax along the last axis (matches F.softmax dim=-1)."""
    m = jnp.max(s, axis=-1, keepdims=True)
    e = jnp.exp(s - m)
    d = jnp.sum(e, axis=-1, keepdims=True)
    # EUP approximate reciprocal (separate VLIW slot) + one Newton-Raphson
    # refinement on the tiny (rows, 1) denominator tensor -> ~f32 accuracy.
    r = pl.reciprocal(d, approx=True)
    r = r * (2.0 - d * r)
    return e * r


def coattn_kernel(wt_ref, b_ref, x_ref, y_ref, mseq_ref, mp_ref):
    # wt_ref: (Hp, Hp) -- nn.Linear weight already transposed (x @ wt == x @ W.T)
    # b_ref : (1, Hp)  -- nn.Linear bias (zero padded)
    # x_ref : (Bt, L1, Hp), y_ref: (Bt, L2, Hp) -- Bt batch elements per step
    Bt, L1, Hp = x_ref.shape
    _, L2, _ = y_ref.shape

    wt = wt_ref[...]
    b = b_ref[...]
    x = x_ref[...]
    y = y_ref[...]

    # Fused projection: one MXU matmul covering both x and y rows.
    rows_x = Bt * L1
    rows_y = Bt * L2
    xy = jnp.concatenate([x.reshape(rows_x, Hp), y.reshape(rows_y, Hp)], axis=0)
    proj = jnp.dot(xy, wt, preferred_element_type=jnp.float32) + b
    proj = jnp.maximum(proj, 0.0)                       # ReLU
    x_proj = proj[:rows_x].reshape(Bt, L1, Hp)
    y_proj = proj[rows_x:].reshape(Bt, L2, Hp)

    # scores (Bt, L1, L2) and scores_p (Bt, L2, L1): contract the hidden axis
    # directly -> no in-kernel transposes of the score tiles.
    scores = jnp.einsum('bik,bjk->bij', x_proj, y_proj,
                        preferred_element_type=jnp.float32)
    scores_p = jnp.einsum('bjk,bik->bji', y_proj, x_proj,
                          preferred_element_type=jnp.float32)

    alpha = _softmax_last(scores)        # softmax over len2
    alpha_p = _softmax_last(scores_p)    # softmax over len1

    # matched_seq = alpha @ y ; matched_p = alpha_p @ x
    mseq = jnp.einsum('bij,bjh->bih', alpha.astype(y.dtype), y,
                      preferred_element_type=jnp.float32)
    mp = jnp.einsum('bji,bih->bjh', alpha_p.astype(x.dtype), x,
                    preferred_element_type=jnp.float32)
    mseq_ref[...] = mseq.astype(mseq_ref.dtype)
    mp_ref[...] = mp.astype(mp_ref.dtype)


def _pick_batch_tile(B, max_bt=8):
    """Largest divisor of B that is <= max_bt while (when possible) keeping at
    least 2 grid steps so both v7x TensorCores get work."""
    cap = min(max_bt, max(1, B // 2))
    for bt in range(cap, 0, -1):
        if B % bt == 0:
            return bt
    return 1


def _pad_last(a, target):
    pad = target - a.shape[-1]
    if pad == 0:
        return a
    return jnp.pad(a, [(0, 0)] * (a.ndim - 1) + [(0, pad)])


@functools.partial(jax.jit, static_argnames=("max_batch_tile",))
def coattn(x, y, w, b, *, max_batch_tile=8):
    """x: (B, len1, h), y: (B, len2, h), w: (h, h) nn.Linear weight, b: (h,).
    Returns (matched_seq (B, len1, h), matched_p (B, len2, h))."""
    B, L1, H = x.shape
    _, L2, _ = y.shape
    Hp = ((H + 127) // 128) * 128          # lane-dense trailing dim
    Bt = _pick_batch_tile(B, max_batch_tile)

    xp = _pad_last(x, Hp)
    yp = _pad_last(y, Hp)
    # Pre-transpose + zero-pad the shared weight once, outside the kernel.
    wt = jnp.pad(w, ((0, Hp - H), (0, Hp - H))).T
    bp = jnp.pad(b, (0, Hp - H)).reshape(1, Hp)

    # Cost estimate: fused projection + 2 score matmuls + 2 weighted sums.
    flops = (2 * B * (L1 + L2) * Hp * Hp
             + 4 * B * L1 * L2 * Hp
             + 4 * B * L1 * L2 * Hp)
    transcendentals = 2 * B * L1 * L2 + B * (L1 + L2)
    itemsize = jnp.dtype(x.dtype).itemsize
    bytes_accessed = itemsize * (2 * B * (L1 + L2) * Hp + Hp * Hp + Hp)
    cost = pl.CostEstimate(flops=flops, transcendentals=transcendentals,
                           bytes_accessed=bytes_accessed)

    # Per-step VMEM budget (in/out blocks, weights, intermediates) with
    # headroom; explicit so the tiling also fits v7x's smaller (64 MiB) VMEM.
    blk = Bt * (L1 + L2) * Hp
    vmem_bytes = 4 * (4 * blk              # input + output blocks
                      + Hp * Hp + Hp       # weight + bias
                      + 3 * blk            # proj / x_proj / y_proj
                      + 4 * Bt * L1 * L2)  # scores / alphas
    vmem_limit = int(min(max(4 * vmem_bytes, 4 * 1024 * 1024),
                         64 * 1024 * 1024))

    out_shapes = (
        jax.ShapeDtypeStruct((B, L1, Hp), x.dtype),
        jax.ShapeDtypeStruct((B, L2, Hp), x.dtype),
    )

    mseq_p, mp_p = pl.pallas_call(
        coattn_kernel,
        out_shape=out_shapes,
        grid_spec=pltpu.PrefetchScalarGridSpec(
            num_scalar_prefetch=0,
            grid=(B // Bt,),
            in_specs=[
                pl.BlockSpec((Hp, Hp), lambda i: (0, 0)),         # weight.T (shared)
                pl.BlockSpec((1, Hp), lambda i: (0, 0)),          # bias (shared)
                pl.BlockSpec((Bt, L1, Hp), lambda i: (i, 0, 0)),  # x batch tile
                pl.BlockSpec((Bt, L2, Hp), lambda i: (i, 0, 0)),  # y batch tile
            ],
            out_specs=[
                pl.BlockSpec((Bt, L1, Hp), lambda i: (i, 0, 0)),
                pl.BlockSpec((Bt, L2, Hp), lambda i: (i, 0, 0)),
            ],
        ),
        compiler_params=pltpu.CompilerParams(
            dimension_semantics=("parallel",),
            vmem_limit_bytes=vmem_limit),
        cost_estimate=cost,
    )(wt, bp, xp, yp)

    # Strip the hidden-dim padding.
    return mseq_p[..., :H], mp_p[..., :H]


def coattn_ref(x, y, w, b):
    """Pure-JAX reference mirroring the PyTorch forward (need_attention=False)."""
    x_proj = jax.nn.relu(jnp.einsum('blh,oh->blo', x, w) + b)
    y_proj = jax.nn.relu(jnp.einsum('blh,oh->blo', y, w) + b)
    scores = jnp.einsum('bik,bjk->bij', x_proj, y_proj)
    scores_p = jnp.einsum('bjk,bik->bji', y_proj, x_proj)
    alpha = jax.nn.softmax(scores, axis=-1)
    alpha_p = jax.nn.softmax(scores_p, axis=-1)
    return (jnp.einsum('bij,bjh->bih', alpha, y),
            jnp.einsum('bji,bih->bjh', alpha_p, x))


if __name__ == "__main__":
    B, L1, L2, H = 2, 8, 8, 32

    key = jax.random.PRNGKey(0)
    kx, ky, kw, kb = jax.random.split(key, 4)
    x = jax.random.normal(kx, (B, L1, H), dtype=jnp.float32)
    y = jax.random.normal(ky, (B, L2, H), dtype=jnp.float32)
    # Deterministic nn.Linear(H, H)-shaped parameters.
    bound = 1.0 / (H ** 0.5)
    w = jax.random.uniform(kw, (H, H), minval=-bound, maxval=bound,
                           dtype=jnp.float32)
    b = jax.random.uniform(kb, (H,), minval=-bound, maxval=bound,
                           dtype=jnp.float32)

    matched_seq, matched_p = coattn(x, y, w, b)
    jax.block_until_ready((matched_seq, matched_p))

    ref_seq, ref_p = coattn_ref(x, y, w, b)
    assert matched_seq.shape == (B, L1, H)
    assert matched_p.shape == (B, L2, H)
    assert jnp.allclose(matched_seq, ref_seq, atol=1e-3, rtol=1e-3), (
        float(jnp.max(jnp.abs(matched_seq - ref_seq))))
    assert jnp.allclose(matched_p, ref_p, atol=1e-3, rtol=1e-3), (
        float(jnp.max(jnp.abs(matched_p - ref_p))))

    print("KERNEL_OK")
</pallas_src>

<mosaic_0001>
module attributes {stable_mosaic.version = 11 : i64} {
  func.func @coattn_kernel(%arg0: i32, %arg1: memref<128x128xf32, #tpu.memory_space<vmem>>, %arg2: memref<1x128xf32, #tpu.memory_space<vmem>>, %arg3: memref<1x8x128xf32, #tpu.memory_space<vmem>>, %arg4: memref<1x8x128xf32, #tpu.memory_space<vmem>>, %arg5: memref<1x8x128xf32, #tpu.memory_space<vmem>>, %arg6: memref<1x8x128xf32, #tpu.memory_space<vmem>>) attributes {dimension_semantics = [#tpu.dimension_semantics<parallel>], iteration_bounds = array<i64: 2>, scalar_prefetch = 0 : i64, scratch_operands = 0 : i64, tpu.core_type = #tpu.core_type<tc>, window_params = [{pipeline_mode = #tpu.pipeline_mode<synchronous>, transform_indices = @transform_0, window_bounds = array<i64: 128, 128>}, {pipeline_mode = #tpu.pipeline_mode<synchronous>, transform_indices = @transform_1, window_bounds = array<i64: 1, 128>}, {transform_indices = @transform_2, window_bounds = array<i64: 1, 8, 128>}, {transform_indices = @transform_3, window_bounds = array<i64: 1, 8, 128>}, {transform_indices = @transform_4, window_bounds = array<i64: 1, 8, 128>}, {transform_indices = @transform_5, window_bounds = array<i64: 1, 8, 128>}]} {
    %c0 = arith.constant 0 : index
    %c0_0 = arith.constant 0 : index
    %0 = vector.load %arg1[%c0, %c0_0] : memref<128x128xf32, #tpu.memory_space<vmem>>, vector<128x128xf32>
    %c0_1 = arith.constant 0 : index
    %c0_2 = arith.constant 0 : index
    %1 = vector.load %arg2[%c0_1, %c0_2] : memref<1x128xf32, #tpu.memory_space<vmem>>, vector<1x128xf32>
    %c0_3 = arith.constant 0 : index
    %c0_4 = arith.constant 0 : index
    %c0_5 = arith.constant 0 : index
    %2 = vector.load %arg3[%c0_3, %c0_4, %c0_5] : memref<1x8x128xf32, #tpu.memory_space<vmem>>, vector<1x8x128xf32>
    %c0_6 = arith.constant 0 : index
    %c0_7 = arith.constant 0 : index
    %c0_8 = arith.constant 0 : index
    %3 = vector.load %arg4[%c0_6, %c0_7, %c0_8] : memref<1x8x128xf32, #tpu.memory_space<vmem>>, vector<1x8x128xf32>
    %4 = vector.shape_cast %2 : vector<1x8x128xf32> to vector<8x128xf32>
    %5 = vector.shape_cast %3 : vector<1x8x128xf32> to vector<8x128xf32>
    %6 = tpu.concatenate %4, %5 in 0 : vector<8x128xf32>, vector<8x128xf32> -> vector<16x128xf32>
    %cst = arith.constant dense<0.000000e+00> : vector<16x128xf32>
    %7 = tpu.matmul %6, %0, %cst {dimension_numbers = #tpu.dot_dimension_numbers<[1], [0], [0], [1], [0, 0, 1, 1], [], []>} : vector<16x128xf32>, vector<128x128xf32>, vector<16x128xf32> -> vector<16x128xf32>
    %8 = vector.broadcast %1 : vector<1x128xf32> to vector<16x128xf32>
    %9 = arith.addf %7, %8 : vector<16x128xf32>
    %cst_9 = arith.constant 0.000000e+00 : f32
    %10 = vector.broadcast %cst_9 : f32 to vector<16x128xf32>
    %11 = arith.maximumf %9, %10 : vector<16x128xf32>
    %12 = vector.extract_strided_slice %11 {offsets = [0, 0], sizes = [8, 128], strides = [1, 1]} : vector<16x128xf32> to vector<8x128xf32>
    %13 = vector.shape_cast %12 : vector<8x128xf32> to vector<1x8x128xf32>
    %14 = vector.extract_strided_slice %11 {offsets = [8, 0], sizes = [8, 128], strides = [1, 1]} : vector<16x128xf32> to vector<8x128xf32>
    %15 = vector.shape_cast %14 : vector<8x128xf32> to vector<1x8x128xf32>
    "tpu.trace_start"() <{level = 10 : i32, message = "bik,bjk->bij"}> : () -> ()
    %cst_10 = arith.constant dense<0.000000e+00> : vector<1x8x8xf32>
    %16 = tpu.matmul %13, %15, %cst_10 {dimension_numbers = #tpu.dot_dimension_numbers<[2], [2], [1], [1], [0, 0, 0, 1, 1, 1], [0], [0]>} : vector<1x8x128xf32>, vector<1x8x128xf32>, vector<1x8x8xf32> -> vector<1x8x8xf32>
    "tpu.trace_stop"() : () -> ()
    "tpu.trace_start"() <{level = 10 : i32, message = "bjk,bik->bji"}> : () -> ()
    %cst_11 = arith.constant dense<0.000000e+00> : vector<1x8x8xf32>
    %17 = tpu.matmul %15, %13, %cst_11 {dimension_numbers = #tpu.dot_dimension_numbers<[2], [2], [1], [1], [0, 0, 0, 1, 1, 1], [0], [0]>} : vector<1x8x128xf32>, vector<1x8x128xf32>, vector<1x8x8xf32> -> vector<1x8x8xf32>
    "tpu.trace_stop"() : () -> ()
    %cst_12 = arith.constant dense<0xFF800000> : vector<1x8xf32>
    %18 = vector.multi_reduction <maximumf>, %16, %cst_12 [2] : vector<1x8x8xf32> to vector<1x8xf32>
    %19 = vector.shape_cast %18 : vector<1x8xf32> to vector<1x8x1xf32>
    %20 = vector.broadcast %19 : vector<1x8x1xf32> to vector<1x8x8xf32>
    %21 = arith.subf %16, %20 : vector<1x8x8xf32>
    %22 = math.exp %21 : vector<1x8x8xf32>
    %cst_13 = arith.constant dense<0.000000e+00> : vector<1x8xf32>
    %23 = vector.multi_reduction <add>, %22, %cst_13 [2] : vector<1x8x8xf32> to vector<1x8xf32>
    %24 = vector.shape_cast %23 : vector<1x8xf32> to vector<1x8x1xf32>
    %25 = tpu.reciprocal %24 {approx = true} : vector<1x8x1xf32> -> vector<1x8x1xf32>
    %26 = arith.mulf %24, %25 : vector<1x8x1xf32>
    %cst_14 = arith.constant 2.000000e+00 : f32
    %27 = vector.broadcast %cst_14 : f32 to vector<1x8x1xf32>
    %28 = arith.subf %27, %26 : vector<1x8x1xf32>
    %29 = arith.mulf %25, %28 : vector<1x8x1xf32>
    %30 = vector.broadcast %29 : vector<1x8x1xf32> to vector<1x8x8xf32>
    %31 = arith.mulf %22, %30 : vector<1x8x8xf32>
    %cst_15 = arith.constant dense<0xFF800000> : vector<1x8xf32>
    %32 = vector.multi_reduction <maximumf>, %17, %cst_15 [2] : vector<1x8x8xf32> to vector<1x8xf32>
    %33 = vector.shape_cast %32 : vector<1x8xf32> to vector<1x8x1xf32>
    %34 = vector.broadcast %33 : vector<1x8x1xf32> to vector<1x8x8xf32>
    %35 = arith.subf %17, %34 : vector<1x8x8xf32>
    %36 = math.exp %35 : vector<1x8x8xf32>
    %cst_16 = arith.constant dense<0.000000e+00> : vector<1x8xf32>
    %37 = vector.multi_reduction <add>, %36, %cst_16 [2] : vector<1x8x8xf32> to vector<1x8xf32>
    %38 = vector.shape_cast %37 : vector<1x8xf32> to vector<1x8x1xf32>
    %39 = tpu.reciprocal %38 {approx = true} : vector<1x8x1xf32> -> vector<1x8x1xf32>
    %40 = arith.mulf %38, %39 : vector<1x8x1xf32>
    %cst_17 = arith.constant 2.000000e+00 : f32
    %41 = vector.broadcast %cst_17 : f32 to vector<1x8x1xf32>
    %42 = arith.subf %41, %40 : vector<1x8x1xf32>
    %43 = arith.mulf %39, %42 : vector<1x8x1xf32>
    %44 = vector.broadcast %43 : vector<1x8x1xf32> to vector<1x8x8xf32>
    %45 = arith.mulf %36, %44 : vector<1x8x8xf32>
    "tpu.trace_start"() <{level = 10 : i32, message = "bij,bjh->bih"}> : () -> ()
    %cst_18 = arith.constant dense<0.000000e+00> : vector<1x8x128xf32>
    %46 = tpu.matmul %31, %3, %cst_18 {dimension_numbers = #tpu.dot_dimension_numbers<[2], [1], [1], [2], [0, 0, 0, 1, 1, 2], [0], [0]>} : vector<1x8x8xf32>, vector<1x8x128xf32>, vector<1x8x128xf32> -> vector<1x8x128xf32>
    "tpu.trace_stop"() : () -> ()
    "tpu.trace_start"() <{level = 10 : i32, message = "bji,bih->bjh"}> : () -> ()
    %cst_19 = arith.constant dense<0.000000e+00> : vector<1x8x128xf32>
    %47 = tpu.matmul %45, %2, %cst_19 {dimension_numbers = #tpu.dot_dimension_numbers<[2], [1], [1], [2], [0, 0, 0, 1, 1, 2], [0], [0]>} : vector<1x8x8xf32>, vector<1x8x128xf32>, vector<1x8x128xf32> -> vector<1x8x128xf32>
    "tpu.trace_stop"() : () -> ()
    %c0_20 = arith.constant 0 : index
    %c0_21 = arith.constant 0 : index
    %c0_22 = arith.constant 0 : index
    %48 = vector.load %arg5[%c0_20, %c0_21, %c0_22] : memref<1x8x128xf32, #tpu.memory_space<vmem>>, vector<1x8x128xf32>
    tpu.vector_store %arg5[%c0_20, %c0_21, %c0_22], %46 {strides = array<i32>} : memref<1x8x128xf32, #tpu.memory_space<vmem>>, vector<1x8x128xf32>,
    %c0_23 = arith.constant 0 : index
    %c0_24 = arith.constant 0 : index
    %c0_25 = arith.constant 0 : index
    %49 = vector.load %arg6[%c0_23, %c0_24, %c0_25] : memref<1x8x128xf32, #tpu.memory_space<vmem>>, vector<1x8x128xf32>
    tpu.vector_store %arg6[%c0_23, %c0_24, %c0_25], %47 {strides = array<i32>} : memref<1x8x128xf32, #tpu.memory_space<vmem>>, vector<1x8x128xf32>,
    return
  }
  func.func @transform_0(%arg0: i32) -> (i32, i32) {
    %c0_i32 = arith.constant 0 : i32
    %c0_i32_0 = arith.constant 0 : i32
    %c0_i32_1 = arith.constant 0 : i32
    return %c0_i32, %c0_i32_0 : i32, i32
  }
  func.func @transform_1(%arg0: i32) -> (i32, i32) {
    %c0_i32 = arith.constant 0 : i32
    %c0_i32_0 = arith.constant 0 : i32
    %c0_i32_1 = arith.constant 0 : i32
    return %c0_i32, %c0_i32_0 : i32, i32
  }
  func.func @transform_2(%arg0: i32) -> (i32, i32, i32) {
    %c0_i32 = arith.constant 0 : i32
    %c0_i32_0 = arith.constant 0 : i32
    %c0_i32_1 = arith.constant 0 : i32
    return %arg0, %c0_i32, %c0_i32_0 : i32, i32, i32
  }
  func.func @transform_3(%arg0: i32) -> (i32, i32, i32) {
    %c0_i32 = arith.constant 0 : i32
    %c0_i32_0 = arith.constant 0 : i32
    %c0_i32_1 = arith.constant 0 : i32
    return %arg0, %c0_i32, %c0_i32_0 : i32, i32, i32
  }
  func.func @transform_4(%arg0: i32) -> (i32, i32, i32) {
    %c0_i32 = arith.constant 0 : i32
    %c0_i32_0 = arith.constant 0 : i32
    %c0_i32_1 = arith.constant 0 : i32
    return %arg0, %c0_i32, %c0_i32_0 : i32, i32, i32
  }
  func.func @transform_5(%arg0: i32) -> (i32, i32, i32) {
    %c0_i32 = arith.constant 0 : i32
    %c0_i32_0 = arith.constant 0 : i32
    %c0_i32_1 = arith.constant 0 : i32
    return %arg0, %c0_i32, %c0_i32_0 : i32, i32, i32
  }
}

</mosaic_0001>

<llo_original>
// kernel: coattn.1
$region0: #{coattn.1}
  #allocation0 [shape = 'u32[]', space=smem, size = 0x4, offset = 0x4, fixed_abs, tag = 'smem constant byte address 0x4 - core index']
  #allocation1 [shape = 'u32[144,128]{1,0:T(1,128)}', space=vmem, size = 0x12000, scoped, tag = 'internal scratch']
  %s0 = inlined_call_operand.vmem [shape: f32[128,128], index: 0, kind: input, shape index: {}]
  %s1 = inlined_call_operand.vmem [shape: f32[1,128], index: 1, kind: input, shape index: {}]
  %s2 = inlined_call_operand.vmem [shape: f32[2,8,128], index: 2, kind: input, shape index: {}]
  %s3 = inlined_call_operand.vmem [shape: f32[2,8,128], index: 3, kind: input, shape index: {}]
  %s4 = inlined_call_operand.hbm [shape: f32[2,8,128], index: 4, kind: output, shape index: {0}]
  %s5 = inlined_call_operand.hbm [shape: f32[2,8,128], index: 5, kind: output, shape index: {1}]
  %6 = xla_tuple %s4, %s5
  %s7 = sld [smem:[#allocation0]]
  $region57: #{coattn.1} parent=0
    _
  %s9 = ssub.s32 1, %s7
  %s10 = scalar_select 0, %s9, %s7
  $region1: #{coattn.1} parent=0
    #allocation2 [shape = 'u8[8192]{0}', space=vmem, size = 0x2000, scoped, tag = 'output window, operand 0']
    #allocation3 [shape = 's32[2]{0}', space=sflag, size = 0x8, scoped, tag = 'scoped memory for coattn.1']
    #allocation4 [shape = 'u8[8192]{0}', space=vmem, size = 0x2000, scoped, tag = 'output window, operand 1']
    #allocation5 [shape = 's32[2]{0}', space=sflag, size = 0x8, scoped, tag = 'scoped memory for coattn.1']
    %11 = vsyncpa [#allocation3], 0
    %s12 = scalar_lea.sflag [#allocation3], 1
    %13 = vsyncpa %s12, 0
    %14 = vsyncpa [#allocation5], 0
    %s15 = scalar_lea.sflag [#allocation5], 1
    %16 = vsyncpa %s15, 0
    loop: start=0, step=1, limit=4
    $region2: #{coattn.1} parent=1 // loop_pre_header
      _
    $region3: #{coattn.1} parent=1 // loop_header
      %s18 = sphi 0, %s22
      %p19 = scmp.ge.s32.totalorder %s18, 4
      %s26 = sphi 0, %s26
      %s28 = sphi 0, %s26
      %s29 = sphi 0, %s28
      %s43 = sphi 0, %s29
      %s47 = sphi 0, %s47
      %s49 = sphi 0, %s47
      %s50 = sphi 0, %s49
      %s64 = sphi 0, %s50
      %s70 = sphi 0, %s72
      %s73 = sphi 0, %s70
      %s74 = sphi 0, %s73
      %s90 = sphi 0, %s74
      %s96 = sphi 0, %s98
      %s99 = sphi 0, %s96
      %s100 = sphi 0, %s99
      %s116 = sphi 0, %s100
      %s122 = sphi 0, %s124
      %s125 = sphi 0, %s122
      %s126 = sphi 0, %s125
      %s142 = sphi 0, %s126
      %s148 = sphi 0, %s150
      %s151 = sphi 0, %s148
      %s152 = sphi 0, %s151
      %s168 = sphi 0, %s152
    $region4: #{coattn.1} parent=1 // loop_header_branch
      %21 = sbr.rel (%p19) target = $region8
    $region5: #{coattn.1} parent=1 // loop_body
      %s23 = ssub.s32 %s18, 1
      %s24 = ssub.s32 %s18, 2
      %s25 = sadd.s32 %s18, 1
      %s27 = sadd.s32 %s26, 1
      %p30 = scmp.eq.s32.totalorder %s18, 1
      %p31 = scmp.ne.s32.totalorder %s26, %s28
      %p32 = scmp.eq.s32.totalorder %s18, 0
      %p33 = por %p31, %p32
      %p34 = scmp.ne.s32.totalorder %s26, %s28
      %p35 = scmp.eq.s32.totalorder %s23, 1
      %p36 = por %p34, %p35
      %p37 = scmp.ne.s32.totalorder %s28, %s29
      %p38 = scmp.eq.s32.totalorder %s23, 0
      %p39 = por %p37, %p38
      %p40 = scmp.ne.s32.totalorder %s28, %s29
      %p41 = scmp.eq.s32.totalorder %s24, 1
      %p42 = por %p40, %p41
      %p44 = scmp.ne.s32.totalorder %s29, %s43
      %p45 = scmp.eq.s32.totalorder %s24, 0
      %p46 = por %p44, %p45
      %s48 = sadd.s32 %s47, 1
      %p51 = scmp.eq.s32.totalorder %s18, 1
      %p52 = scmp.ne.s32.totalorder %s47, %s49
      %p53 = scmp.eq.s32.totalorder %s18, 0
      %p54 = por %p52, %p53
      %p55 = scmp.ne.s32.totalorder %s47, %s49
      %p56 = scmp.eq.s32.totalorder %s23, 1
      %p57 = por %p55, %p56
      %p58 = scmp.ne.s32.totalorder %s49, %s50
      %p59 = scmp.eq.s32.totalorder %s23, 0
      %p60 = por %p58, %p59
      %p61 = scmp.ne.s32.totalorder %s49, %s50
      %p62 = scmp.eq.s32.totalorder %s24, 1
      %p63 = por %p61, %p62
      %p65 = scmp.ne.s32.totalorder %s50, %s64
      %p66 = scmp.eq.s32.totalorder %s24, 0
      %p67 = por %p65, %p66
      %s68 = ssub.s32 %s18, %s25
      %p69 = scmp.eq.s32.totalorder %s68, 0
      %s71 = sadd.s32 %s70, 1
      %s72 = scalar_select %p69, %s70, %s71
      %p75 = pneg %p69
      %p76 = scmp.eq.s32.totalorder %s18, 1
      %p77 = por %p75, %p76
      %p78 = scmp.ne.s32.totalorder %s70, %s73
      %p79 = scmp.eq.s32.totalorder %s18, 0
      %p80 = por %p78, %p79
      %p81 = scmp.ne.s32.totalorder %s70, %s73
      %p82 = scmp.eq.s32.totalorder %s23, 1
      %p83 = por %p81, %p82
      %p84 = scmp.ne.s32.totalorder %s73, %s74
      %p85 = scmp.eq.s32.totalorder %s23, 0
      %p86 = por %p84, %p85
      %p87 = scmp.ne.s32.totalorder %s73, %s74
      %p88 = scmp.eq.s32.totalorder %s24, 1
      %p89 = por %p87, %p88
      %p91 = scmp.ne.s32.totalorder %s74, %s90
      %p92 = scmp.eq.s32.totalorder %s24, 0
      %p93 = por %p91, %p92
      %s94 = ssub.s32 %s18, %s25
      %p95 = scmp.eq.s32.totalorder %s94, 0
      %s97 = sadd.s32 %s96, 1
      %s98 = scalar_select %p95, %s96, %s97
      %p101 = pneg %p95
      %p102 = scmp.eq.s32.totalorder %s18, 1
      %p103 = por %p101, %p102
      %p104 = scmp.ne.s32.totalorder %s96, %s99
      %p105 = scmp.eq.s32.totalorder %s18, 0
      %p106 = por %p104, %p105
      %p107 = scmp.ne.s32.totalorder %s96, %s99
      %p108 = scmp.eq.s32.totalorder %s23, 1
      %p109 = por %p107, %p108
      %p110 = scmp.ne.s32.totalorder %s99, %s100
      %p111 = scmp.eq.s32.totalorder %s23, 0
      %p112 = por %p110, %p111
      %p113 = scmp.ne.s32.totalorder %s99, %s100
      %p114 = scmp.eq.s32.totalorder %s24, 1
      %p115 = por %p113, %p114
      %p117 = scmp.ne.s32.totalorder %s100, %s116
      %p118 = scmp.eq.s32.totalorder %s24, 0
      %p119 = por %p117, %p118
      %s120 = ssub.s32 %s18, %s25
      %p121 = scmp.eq.s32.totalorder %s120, 0
      %s123 = sadd.s32 %s122, 1
      %s124 = scalar_select %p121, %s122, %s123
      %p127 = pneg %p121
      %p128 = scmp.eq.s32.totalorder %s18, 1
      %p129 = por %p127, %p128
      %p130 = scmp.ne.s32.totalorder %s122, %s125
      %p131 = scmp.eq.s32.totalorder %s18, 0
      %p132 = por %p130, %p131
      %p133 = scmp.ne.s32.totalorder %s122, %s125
      %p134 = scmp.eq.s32.totalorder %s23, 1
      %p135 = por %p133, %p134
      %p136 = scmp.ne.s32.totalorder %s125, %s126
      %p137 = scmp.eq.s32.totalorder %s23, 0
      %p138 = por %p136, %p137
      %p139 = scmp.ne.s32.totalorder %s125, %s126
      %p140 = scmp.eq.s32.totalorder %s24, 1
      %p141 = por %p139, %p140
      %p143 = scmp.ne.s32.totalorder %s126, %s142
      %p144 = scmp.eq.s32.totalorder %s24, 0
      %p145 = por %p143, %p144
      %s146 = ssub.s32 %s18, %s25
      %p147 = scmp.eq.s32.totalorder %s146, 0
      %s149 = sadd.s32 %s148, 1
      %s150 = scalar_select %p147, %s148, %s149
      %p153 = pneg %p147
      %p154 = scmp.eq.s32.totalorder %s18, 1
      %p155 = por %p153, %p154
      %p156 = scmp.ne.s32.totalorder %s148, %s151
      %p157 = scmp.eq.s32.totalorder %s18, 0
      %p158 = por %p156, %p157
      %p159 = scmp.ne.s32.totalorder %s148, %s151
      %p160 = scmp.eq.s32.totalorder %s23, 1
      %p161 = por %p159, %p160
      %p162 = scmp.ne.s32.totalorder %s151, %s152
      %p163 = scmp.eq.s32.totalorder %s23, 0
      %p164 = por %p162, %p163
      %p165 = scmp.ne.s32.totalorder %s151, %s152
      %p166 = scmp.eq.s32.totalorder %s24, 1
      %p167 = por %p165, %p166
      %p169 = scmp.ne.s32.totalorder %s152, %s168
      %p170 = scmp.eq.s32.totalorder %s24, 0
      %p171 = por %p169, %p170
      %p172 = scmp.le.s32.totalorder 1, %s18
      %p173 = scmp.lt.s32.totalorder %s18, 3
      %p174 = pnand %p172, %p173
      %p175 = pneg %p174
      // Predicated region
      $region9: #{coattn.1} parent=5 // pred_check
        _
      $region10: #{coattn.1} parent=5 // pred_check_branch
        %177 = sbr.rel (%p174) target = $region12
      $region11: #{coattn.1} parent=5 // pred_region
        %s178 = ssub.s32 %s18, 1
        // Predicated region
        $region13: #{coattn.1} parent=11 // pred_check
          %p179 = pneg %p39
        $region14: #{coattn.1} parent=11 // pred_check_branch
          %181 = sbr.rel (%p179) target = $region16
        $region15: #{coattn.1} parent=11 // pred_region
          _
        $region16: #{coattn.1} parent=11 // pred_fallthru
          _
        // Predicated region
        $region17: #{coattn.1} parent=11 // pred_check
          %p182 = pneg %p60
        $region18: #{coattn.1} parent=11 // pred_check_branch
          %184 = sbr.rel (%p182) target = $region20
        $region19: #{coattn.1} parent=11 // pred_region
          _
        $region20: #{coattn.1} parent=11 // pred_fallthru
          _
      $region12: #{coattn.1} parent=5 // pred_fallthru
        _
      %p185 = scmp.lt.s32.totalorder %s18, 2
      // Predicated region
      $region21: #{coattn.1} parent=5 // pred_check
        %p186 = pneg %p185
      $region22: #{coattn.1} parent=5 // pred_check_branch
        %188 = sbr.rel (%p186) target = $region24
      $region23: #{coattn.1} parent=5 // pred_region
        // Predicated region
        $region25: #{coattn.1} parent=23 // pred_check
          %p189 = pneg %p80
        $region26: #{coattn.1} parent=23 // pred_check_branch
          %191 = sbr.rel (%p189) target = $region28
        $region27: #{coattn.1} parent=23 // pred_region
          %p192 = scmp.lt.s32.totalorder %s18, 1
          %s193 = scalar_select %p192, %s18, 1
          %s194 = smul.addr %s193, 8
          %s195 = scalar_lea.vmem %s2, %s194
        $region28: #{coattn.1} parent=23 // pred_fallthru
          _
        // Predicated region
        $region29: #{coattn.1} parent=23 // pred_check
          %p196 = pneg %p106
        $region30: #{coattn.1} parent=23 // pred_check_branch
          %198 = sbr.rel (%p196) target = $region32
        $region31: #{coattn.1} parent=23 // pred_region
          %p199 = scmp.lt.s32.totalorder %s18, 1
          %s200 = scalar_select %p199, %s18, 1
          %s201 = smul.addr %s200, 8
          %s202 = scalar_lea.vmem %s3, %s201
        $region32: #{coattn.1} parent=23 // pred_fallthru
          _
      $region24: #{coattn.1} parent=5 // pred_fallthru
        _
      %p203 = scmp.le.s32.totalorder 1, %s18
      %p204 = scmp.lt.s32.totalorder %s18, 3
      %p205 = pnand %p203, %p204
      %p206 = pneg %p205
      // Predicated region
      $region33: #{coattn.1} parent=5 // pred_check
        _
      $region34: #{coattn.1} parent=5 // pred_check_branch
        %208 = sbr.rel (%p205) target = $region36
      $region35: #{coattn.1} parent=5 // pred_region
        %s209 = ssub.s32 %s18, 1
        %p210 = pneg %p39
        %p211 = pneg %p36
        %p212 = pneg %p60
        %p213 = pneg %p57
        %p214 = scmp.lt.s32.totalorder %s23, 1
        %s215 = scalar_select %p214, %s23, 1
        %s216 = smul.addr %s215, 8
        %s217 = scalar_lea.vmem %s2, %s216
        %p218 = pneg %p86
        %p219 = pneg %p83
        %p220 = scmp.lt.s32.totalorder %s23, 1
        %s221 = scalar_select %p220, %s23, 1
        %s222 = smul.addr %s221, 8
        %s223 = scalar_lea.vmem %s3, %s222
        %p224 = pneg %p112
        %p225 = pneg %p109
        %p226 = pneg %p138
        %p227 = pneg %p135
        %s228 = sand.u32 %s125, 1
        %s229 = scalar_lea.sflag [#allocation3], %s228
        %s230 = sand.u32 %s125, 1
        %s231 = smul.addr %s230, 8
        %s232 = scalar_lea.vmem [#allocation2], %s231
        %p233 = pneg %p164
        %p234 = pneg %p161
        %s235 = sand.u32 %s151, 1
        %s236 = scalar_lea.sflag [#allocation5], %s235
        %s237 = sand.u32 %s151, 1
        %s238 = smul.addr %s237, 8
        %s239 = scalar_lea.vmem [#allocation4], %s238
        %p240 = scmp.lt.s32.totalorder %s23, 1
        %s241 = scalar_select %p240, %s23, 1
        %s242 = smul.addr %s241, 8
        %s243 = scalar_lea.vmem %s2, %s242
        %p244 = scmp.lt.s32.totalorder %s23, 1
        %s245 = scalar_select %p244, %s23, 1
        %s246 = smul.addr %s245, 8
        %s247 = scalar_lea.vmem %s3, %s246
        %v248 = vld [vmem:[%s0] sm:$0xff]
        %v249 = vld [vmem:[%s0 + $0x8] sm:$0xff]
        %v250 = vld [vmem:[%s0 + $0x10] sm:$0xff]
        %v251 = vld [vmem:[%s0 + $0x18] sm:$0xff]
        %v252 = vld [vmem:[%s0 + $0x20] sm:$0xff]
        %v253 = vld [vmem:[%s0 + $0x28] sm:$0xff]
        %v254 = vld [vmem:[%s0 + $0x30] sm:$0xff]
        %v255 = vld [vmem:[%s0 + $0x38] sm:$0xff]
        %v256 = vld [vmem:[%s0 + $0x40] sm:$0xff]
        %v257 = vld [vmem:[%s0 + $0x48] sm:$0xff]
        %v258 = vld [vmem:[%s0 + $0x50] sm:$0xff]
        %v259 = vld [vmem:[%s0 + $0x58] sm:$0xff]
        %v260 = vld [vmem:[%s0 + $0x60] sm:$0xff]
        %v261 = vld [vmem:[%s0 + $0x68] sm:$0xff]
        %v262 = vld [vmem:[%s0 + $0x70] sm:$0xff]
        %v263 = vld [vmem:[%s0 + $0x78] sm:$0xff]
        %v264 = vld [vmem:[%s1] sm:$0x1]
        %v265 = vld [vmem:[%s243] sm:$0xff]
        %v266 = vld [vmem:[%s247] sm:$0xff]
        %v268 = vlaneseq
        %v269 = vshrl.u32 %v268, 7
        %v270 = vsub.s32 0, %v269
        %v271 = vrot.slane %v264, %v270
        %273 = vmatprep.subr.mxu0 0.0
        %274 = vmatpush1.msra.mxu0 %v263
        %275 = vmatprep.subr.mxu0 0.0
        %276 = vmatpush1.msra.mxu0 %v262
        %277 = vmatprep.subr.mxu0 0.0
        %278 = vmatpush1.msra.mxu0 %v261
        %279 = vmatprep.subr.mxu0 0.0
        %280 = vmatpush1.msra.mxu0 %v260
        %281 = vmatprep.subr.mxu0 0.0
        %282 = vmatpush1.msra.mxu0 %v259
        %283 = vmatprep.subr.mxu0 0.0
        %284 = vmatpush1.msra.mxu0 %v258
        %285 = vmatprep.subr.mxu0 0.0
        %286 = vmatpush1.msra.mxu0 %v257
        %287 = vmatprep.subr.mxu0 0.0
        %288 = vmatpush1.msra.mxu0 %v256
        %289 = vmatprep.subr.mxu0 0.0
        %290 = vmatpush1.msra.mxu0 %v255
        %291 = vmatprep.subr.mxu0 0.0
        %292 = vmatpush1.msra.mxu0 %v254
        %293 = vmatprep.subr.mxu0 0.0
        %294 = vmatpush1.msra.mxu0 %v253
        %295 = vmatprep.subr.mxu0 0.0
        %296 = vmatpush1.msra.mxu0 %v252
        %297 = vmatprep.subr.mxu0 0.0
        %298 = vmatpush1.msra.mxu0 %v251
        %299 = vmatprep.subr.mxu0 0.0
        %300 = vmatpush1.msra.mxu0 %v250
        %301 = vmatprep.subr.mxu0 0.0
        %302 = vmatpush1.msra.mxu0 %v249
        %303 = vmatprep.subr.mxu0 0.0
        %304 = vmatpush1.msra.mxu0 %v248
        %305 = vmatprep.subr.mxu0 0.0
        %306 = vmatpush2.msra.mxu0 0.0
        %307 = vmatprep.subr.mxu0 0.0
        %308 = vmatpush2.msra.mxu0 0.0
        %309 = vmatprep.subr.mxu0 0.0
        %310 = vmatpush2.msra.mxu0 0.0
        %311 = vmatprep.subr.mxu0 0.0
        %312 = vmatpush2.msra.mxu0 0.0
        %313 = vmatprep.subr.mxu0 0.0
        %314 = vmatpush2.msra.mxu0 0.0
        %315 = vmatprep.subr.mxu0 0.0
        %316 = vmatpush2.msra.mxu0 0.0
        %317 = vmatprep.subr.mxu0 0.0
        %318 = vmatpush2.msra.mxu0 0.0
        %319 = vmatprep.subr.mxu0 0.0
        %320 = vmatpush2.msra.mxu0 0.0
        %321 = vmatprep.subr.mxu0 0.0
        %322 = vmatpush2.msra.mxu0 0.0
        %323 = vmatprep.subr.mxu0 0.0
        %324 = vmatpush2.msra.mxu0 0.0
        %325 = vmatprep.subr.mxu0 0.0
        %326 = vmatpush2.msra.mxu0 0.0
        %327 = vmatprep.subr.mxu0 0.0
        %328 = vmatpush2.msra.mxu0 0.0
        %329 = vmatprep.subr.mxu0 0.0
        %330 = vmatpush2.msra.mxu0 0.0
        %331 = vmatprep.subr.mxu0 0.0
        %332 = vmatpush2.msra.mxu0 0.0
        %333 = vmatprep.subr.mxu0 0.0
        %334 = vmatpush2.msra.mxu0 0.0
        %335 = vmatprep.subr.mxu0 0.0
        %336 = vmatpush2.msra.mxu0 0.0
        %337 = vmatprep.mubr.f32.mxu0 0.0
        %338 = vmatmul.mubr.f32.gmra.mxu0 %v265
        %v339 = vpop.f32.mrf.mxu0
        %v340 = vadd.f32 %v271, %v339
        %v341 = vpop.f32.mrf.mxu0
        %342 = vmatprep.mubr.f32.mxu0 0.0
        %343 = vmatmul.mubr.f32.gmra.mxu0 %v266
        %v344 = vpop.f32.mrf.mxu0
        %v345 = vadd.f32 %v271, %v344
        %v346 = vpop.f32.mrf.mxu0
        %347 = vdwg.mxu0
        %v348 = vmax.f32 %v340, 0.0
        %v349 = vmax.f32 %v345, 0.0
        %350 = vmatprep.subr.mxu0 0.0
        %351 = vmatpush1.xpose.msra.mxu0 0.0
        %352 = vmatprep.subr.mxu0 0.0
        %353 = vmatpush1.xpose.msra.mxu0 0.0
        %354 = vmatprep.subr.mxu0 0.0
        %355 = vmatpush1.xpose.msra.mxu0 0.0
        %356 = vmatprep.subr.mxu0 0.0
        %357 = vmatpush1.xpose.msra.mxu0 0.0
        %358 = vmatprep.subr.mxu0 0.0
        %359 = vmatpush1.xpose.msra.mxu0 0.0
        %360 = vmatprep.subr.mxu0 0.0
        %361 = vmatpush1.xpose.msra.mxu0 0.0
        %362 = vmatprep.subr.mxu0 0.0
        %363 = vmatpush1.xpose.msra.mxu0 0.0
        %364 = vmatprep.subr.mxu0 0.0
        %365 = vmatpush1.xpose.msra.mxu0 0.0
        %366 = vmatprep.subr.mxu0 0.0
        %367 = vmatpush1.xpose.msra.mxu0 0.0
        %368 = vmatprep.subr.mxu0 0.0
        %369 = vmatpush1.xpose.msra.mxu0 0.0
        %370 = vmatprep.subr.mxu0 0.0
        %371 = vmatpush1.xpose.msra.mxu0 0.0
        %372 = vmatprep.subr.mxu0 0.0
        %373 = vmatpush1.xpose.msra.mxu0 0.0
        %374 = vmatprep.subr.mxu0 0.0
        %375 = vmatpush1.xpose.msra.mxu0 0.0
        %376 = vmatprep.subr.mxu0 0.0
        %377 = vmatpush1.xpose.msra.mxu0 0.0
        %378 = vmatprep.subr.mxu0 0.0
        %379 = vmatpush1.xpose.msra.mxu0 0.0
        %380 = vmatprep.subr.mxu0 0.0
        %381 = vmatpush1.xpose.msra.mxu0 %v349
        %382 = vmatprep.subr.mxu0 0.0
        %383 = vmatpush2.xpose.msra.mxu0 0.0
        %384 = vmatprep.subr.mxu0 0.0
        %385 = vmatpush2.xpose.msra.mxu0 0.0
        %386 = vmatprep.subr.mxu0 0.0
        %387 = vmatpush2.xpose.msra.mxu0 0.0
        %388 = vmatprep.subr.mxu0 0.0
        %389 = vmatpush2.xpose.msra.mxu0 0.0
        %390 = vmatprep.subr.mxu0 0.0
        %391 = vmatpush2.xpose.msra.mxu0 0.0
        %392 = vmatprep.subr.mxu0 0.0
        %393 = vmatpush2.xpose.msra.mxu0 0.0
        %394 = vmatprep.subr.mxu0 0.0
        %395 = vmatpush2.xpose.msra.mxu0 0.0
        %396 = vmatprep.subr.mxu0 0.0
        %397 = vmatpush2.xpose.msra.mxu0 0.0
        %398 = vmatprep.subr.mxu0 0.0
        %399 = vmatpush2.xpose.msra.mxu0 0.0
        %400 = vmatprep.subr.mxu0 0.0
        %401 = vmatpush2.xpose.msra.mxu0 0.0
        %402 = vmatprep.subr.mxu0 0.0
        %403 = vmatpush2.xpose.msra.mxu0 0.0
        %404 = vmatprep.subr.mxu0 0.0
        %405 = vmatpush2.xpose.msra.mxu0 0.0
        %406 = vmatprep.subr.mxu0 0.0
        %407 = vmatpush2.xpose.msra.mxu0 0.0
        %408 = vmatprep.subr.mxu0 0.0
        %409 = vmatpush2.xpose.msra.mxu0 0.0
        %410 = vmatprep.subr.mxu0 0.0
        %411 = vmatpush2.xpose.msra.mxu0 0.0
        %412 = vmatprep.subr.mxu0 0.0
        %413 = vmatpush2.xpose.msra.mxu0 0.0
        %414 = vmatprep.mubr.f32.mxu0 0.0
        %415 = vmatmul.mubr.f32.gmra.mxu0 %v348
        %v416 = vpop.f32.mrf.mxu0
        %v417 = vadd.f32 0.0, %v416
        %v418 = vpop.f32.mrf.mxu0
        %419 = vdwg.mxu0
        %420 = vmatprep.subr.mxu0 0.0
        %421 = vmatpush1.xpose.msra.mxu0 0.0
        %422 = vmatprep.subr.mxu0 0.0
        %423 = vmatpush1.xpose.msra.mxu0 0.0
        %424 = vmatprep.subr.mxu0 0.0
        %425 = vmatpush1.xpose.msra.mxu0 0.0
        %426 = vmatprep.subr.mxu0 0.0
        %427 = vmatpush1.xpose.msra.mxu0 0.0
        %428 = vmatprep.subr.mxu0 0.0
        %429 = vmatpush1.xpose.msra.mxu0 0.0
        %430 = vmatprep.subr.mxu0 0.0
        %431 = vmatpush1.xpose.msra.mxu0 0.0
        %432 = vmatprep.subr.mxu0 0.0
        %433 = vmatpush1.xpose.msra.mxu0 0.0
        %434 = vmatprep.subr.mxu0 0.0
        %435 = vmatpush1.xpose.msra.mxu0 0.0
        %436 = vmatprep.subr.mxu0 0.0
        %437 = vmatpush1.xpose.msra.mxu0 0.0
        %438 = vmatprep.subr.mxu0 0.0
        %439 = vmatpush1.xpose.msra.mxu0 0.0
        %440 = vmatprep.subr.mxu0 0.0
        %441 = vmatpush1.xpose.msra.mxu0 0.0
        %442 = vmatprep.subr.mxu0 0.0
        %443 = vmatpush1.xpose.msra.mxu0 0.0
        %444 = vmatprep.subr.mxu0 0.0
        %445 = vmatpush1.xpose.msra.mxu0 0.0
        %446 = vmatprep.subr.mxu0 0.0
        %447 = vmatpush1.xpose.msra.mxu0 0.0
        %448 = vmatprep.subr.mxu0 0.0
        %449 = vmatpush1.xpose.msra.mxu0 0.0
        %450 = vmatprep.subr.mxu0 0.0
        %451 = vmatpush1.xpose.msra.mxu0 %v348
        %452 = vmatprep.subr.mxu0 0.0
        %453 = vmatpush2.xpose.msra.mxu0 0.0
        %454 = vmatprep.subr.mxu0 0.0
        %455 = vmatpush2.xpose.msra.mxu0 0.0
        %456 = vmatprep.subr.mxu0 0.0
        %457 = vmatpush2.xpose.msra.mxu0 0.0
        %458 = vmatprep.subr.mxu0 0.0
        %459 = vmatpush2.xpose.msra.mxu0 0.0
        %460 = vmatprep.subr.mxu0 0.0
        %461 = vmatpush2.xpose.msra.mxu0 0.0
        %462 = vmatprep.subr.mxu0 0.0
        %463 = vmatpush2.xpose.msra.mxu0 0.0
        %464 = vmatprep.subr.mxu0 0.0
        %465 = vmatpush2.xpose.msra.mxu0 0.0
        %466 = vmatprep.subr.mxu0 0.0
        %467 = vmatpush2.xpose.msra.mxu0 0.0
        %468 = vmatprep.subr.mxu0 0.0
        %469 = vmatpush2.xpose.msra.mxu0 0.0
        %470 = vmatprep.subr.mxu0 0.0
        %471 = vmatpush2.xpose.msra.mxu0 0.0
        %472 = vmatprep.subr.mxu0 0.0
        %473 = vmatpush2.xpose.msra.mxu0 0.0
        %474 = vmatprep.subr.mxu0 0.0
        %475 = vmatpush2.xpose.msra.mxu0 0.0
        %476 = vmatprep.subr.mxu0 0.0
        %477 = vmatpush2.xpose.msra.mxu0 0.0
        %478 = vmatprep.subr.mxu0 0.0
        %479 = vmatpush2.xpose.msra.mxu0 0.0
        %480 = vmatprep.subr.mxu0 0.0
        %481 = vmatpush2.xpose.msra.mxu0 0.0
        %482 = vmatprep.subr.mxu0 0.0
        %483 = vmatpush2.xpose.msra.mxu0 0.0
        %484 = vmatprep.mubr.f32.mxu0 0.0
        %485 = vmatmul.mubr.f32.gmra.mxu0 %v349
        %v486 = vpop.f32.mrf.mxu0
        %v487 = vadd.f32 0.0, %v486
        %v488 = vpop.f32.mrf.mxu0
        %489 = vdwg.mxu0
        %vm490 = vcmask 64512
        %v491 = vsel %vm490, %v417, -inf
        %492 = vmax.xlane.f32.xlu0 %v491
        %v493 = vpop.xlane.xlu0 %492
        %v494 = vsub.f32 %v417, %v493
        %v495 = vmul.f32 %v494, 1.442695
        %v496 = vpow.pop %v495
        %v497 = vsel %vm490, %v496, 0.0
        %498 = vadd.xlane.f32.xlu0 %v497
        %v499 = vpop.xlane.xlu0 %498
        %v500 = vrcp.pop %v499
        %v501 = vmul.f32 %v499, %v500
        %v502 = vsub.f32 2.0, %v501
        %v503 = vmul.f32 %v500, %v502
        %v504 = vmul.f32 %v496, %v503
        %v505 = vsel %vm490, %v487, -inf
        %506 = vmax.xlane.f32.xlu0 %v505
        %v507 = vpop.xlane.xlu0 %506
        %v508 = vsub.f32 %v487, %v507
        %v509 = vmul.f32 %v508, 1.442695
        %v510 = vpow.pop %v509
        %v511 = vsel %vm490, %v510, 0.0
        %512 = vadd.xlane.f32.xlu0 %v511
        %v513 = vpop.xlane.xlu0 %512
        %v514 = vrcp.pop %v513
        %v515 = vmul.f32 %v513, %v514
        %v516 = vsub.f32 2.0, %v515
        %v517 = vmul.f32 %v514, %v516
        %v518 = vmul.f32 %v510, %v517
        %v520 = vsel %vm490, %v504, 0
        %522 = vmatprep.subr.mxu0 0.0
        %523 = vmatpush1.msra.mxu0 0.0
        %524 = vmatprep.subr.mxu0 0.0
        %525 = vmatpush1.msra.mxu0 0.0
        %526 = vmatprep.subr.mxu0 0.0
        %527 = vmatpush1.msra.mxu0 0.0
        %528 = vmatprep.subr.mxu0 0.0
        %529 = vmatpush1.msra.mxu0 0.0
        %530 = vmatprep.subr.mxu0 0.0
        %531 = vmatpush1.msra.mxu0 0.0
        %532 = vmatprep.subr.mxu0 0.0
        %533 = vmatpush1.msra.mxu0 0.0
        %534 = vmatprep.subr.mxu0 0.0
        %535 = vmatpush1.msra.mxu0 0.0
        %536 = vmatprep.subr.mxu0 0.0
        %537 = vmatpush1.msra.mxu0 0.0
        %538 = vmatprep.subr.mxu0 0.0
        %539 = vmatpush1.msra.mxu0 0.0
        %540 = vmatprep.subr.mxu0 0.0
        %541 = vmatpush1.msra.mxu0 0.0
        %542 = vmatprep.subr.mxu0 0.0
        %543 = vmatpush1.msra.mxu0 0.0
        %544 = vmatprep.subr.mxu0 0.0
        %545 = vmatpush1.msra.mxu0 0.0
        %546 = vmatprep.subr.mxu0 0.0
        %547 = vmatpush1.msra.mxu0 0.0
        %548 = vmatprep.subr.mxu0 0.0
        %549 = vmatpush1.msra.mxu0 0.0
        %550 = vmatprep.subr.mxu0 0.0
        %551 = vmatpush1.msra.mxu0 0.0
        %552 = vmatprep.subr.mxu0 0.0
        %553 = vmatpush1.msra.mxu0 %v266
        %554 = vmatprep.subr.mxu0 0.0
        %555 = vmatpush2.msra.mxu0 0.0
        %556 = vmatprep.subr.mxu0 0.0
        %557 = vmatpush2.msra.mxu0 0.0
        %558 = vmatprep.subr.mxu0 0.0
        %559 = vmatpush2.msra.mxu0 0.0
        %560 = vmatprep.subr.mxu0 0.0
        %561 = vmatpush2.msra.mxu0 0.0
        %562 = vmatprep.subr.mxu0 0.0
        %563 = vmatpush2.msra.mxu0 0.0
        %564 = vmatprep.subr.mxu0 0.0
        %565 = vmatpush2.msra.mxu0 0.0
        %566 = vmatprep.subr.mxu0 0.0
        %567 = vmatpush2.msra.mxu0 0.0
        %568 = vmatprep.subr.mxu0 0.0
        %569 = vmatpush2.msra.mxu0 0.0
        %570 = vmatprep.subr.mxu0 0.0
        %571 = vmatpush2.msra.mxu0 0.0
        %572 = vmatprep.subr.mxu0 0.0
        %573 = vmatpush2.msra.mxu0 0.0
        %574 = vmatprep.subr.mxu0 0.0
        %575 = vmatpush2.msra.mxu0 0.0
        %576 = vmatprep.subr.mxu0 0.0
        %577 = vmatpush2.msra.mxu0 0.0
        %578 = vmatprep.subr.mxu0 0.0
        %579 = vmatpush2.msra.mxu0 0.0
        %580 = vmatprep.subr.mxu0 0.0
        %581 = vmatpush2.msra.mxu0 0.0
        %582 = vmatprep.subr.mxu0 0.0
        %583 = vmatpush2.msra.mxu0 0.0
        %584 = vmatprep.subr.mxu0 0.0
        %585 = vmatpush2.msra.mxu0 0.0
        %586 = vmatprep.mubr.f32.mxu0 0.0
        %587 = vmatmul.mubr.f32.gmra.mxu0 %v520
        %v588 = vpop.f32.mrf.mxu0
        %v589 = vadd.f32 0.0, %v588
        %v590 = vpop.f32.mrf.mxu0
        %591 = vdwg.mxu0
        %v593 = vsel %vm490, %v518, 0
        %595 = vmatprep.subr.mxu0 0.0
        %596 = vmatpush1.msra.mxu0 0.0
        %597 = vmatprep.subr.mxu0 0.0
        %598 = vmatpush1.msra.mxu0 0.0
        %599 = vmatprep.subr.mxu0 0.0
        %600 = vmatpush1.msra.mxu0 0.0
        %601 = vmatprep.subr.mxu0 0.0
        %602 = vmatpush1.msra.mxu0 0.0
        %603 = vmatprep.subr.mxu0 0.0
        %604 = vmatpush1.msra.mxu0 0.0
        %605 = vmatprep.subr.mxu0 0.0
        %606 = vmatpush1.msra.mxu0 0.0
        %607 = vmatprep.subr.mxu0 0.0
        %608 = vmatpush1.msra.mxu0 0.0
        %609 = vmatprep.subr.mxu0 0.0
        %610 = vmatpush1.msra.mxu0 0.0
        %611 = vmatprep.subr.mxu0 0.0
        %612 = vmatpush1.msra.mxu0 0.0
        %613 = vmatprep.subr.mxu0 0.0
        %614 = vmatpush1.msra.mxu0 0.0
        %615 = vmatprep.subr.mxu0 0.0
        %616 = vmatpush1.msra.mxu0 0.0
        %617 = vmatprep.subr.mxu0 0.0
        %618 = vmatpush1.msra.mxu0 0.0
        %619 = vmatprep.subr.mxu0 0.0
        %620 = vmatpush1.msra.mxu0 0.0
        %621 = vmatprep.subr.mxu0 0.0
        %622 = vmatpush1.msra.mxu0 0.0
        %623 = vmatprep.subr.mxu0 0.0
        %624 = vmatpush1.msra.mxu0 0.0
        %625 = vmatprep.subr.mxu0 0.0
        %626 = vmatpush1.msra.mxu0 %v265
        %627 = vmatprep.subr.mxu0 0.0
        %628 = vmatpush2.msra.mxu0 0.0
        %629 = vmatprep.subr.mxu0 0.0
        %630 = vmatpush2.msra.mxu0 0.0
        %631 = vmatprep.subr.mxu0 0.0
        %632 = vmatpush2.msra.mxu0 0.0
        %633 = vmatprep.subr.mxu0 0.0
        %634 = vmatpush2.msra.mxu0 0.0
        %635 = vmatprep.subr.mxu0 0.0
        %636 = vmatpush2.msra.mxu0 0.0
        %637 = vmatprep.subr.mxu0 0.0
        %638 = vmatpush2.msra.mxu0 0.0
        %639 = vmatprep.subr.mxu0 0.0
        %640 = vmatpush2.msra.mxu0 0.0
        %641 = vmatprep.subr.mxu0 0.0
        %642 = vmatpush2.msra.mxu0 0.0
        %643 = vmatprep.subr.mxu0 0.0
        %644 = vmatpush2.msra.mxu0 0.0
        %645 = vmatprep.subr.mxu0 0.0
        %646 = vmatpush2.msra.mxu0 0.0
        %647 = vmatprep.subr.mxu0 0.0
        %648 = vmatpush2.msra.mxu0 0.0
        %649 = vmatprep.subr.mxu0 0.0
        %650 = vmatpush2.msra.mxu0 0.0
        %651 = vmatprep.subr.mxu0 0.0
        %652 = vmatpush2.msra.mxu0 0.0
        %653 = vmatprep.subr.mxu0 0.0
        %654 = vmatpush2.msra.mxu0 0.0
        %655 = vmatprep.subr.mxu0 0.0
        %656 = vmatpush2.msra.mxu0 0.0
        %657 = vmatprep.subr.mxu0 0.0
        %658 = vmatpush2.msra.mxu0 0.0
        %659 = vmatprep.mubr.f32.mxu0 0.0
        %660 = vmatmul.mubr.f32.gmra.mxu0 %v593
        %v661 = vpop.f32.mrf.mxu0
        %v662 = vadd.f32 0.0, %v661
        %v663 = vpop.f32.mrf.mxu0
        %664 = vdwg.mxu0
        %665 = vst [vmem:[%s232] sm:$0xff] %v589
        %666 = vst [vmem:[%s239] sm:$0xff] %v662
        %s667 = sand.u32 %s125, 1
        %s668 = scalar_lea.sflag [#allocation3], %s667
        %s669 = sand.u32 %s125, 1
        %s670 = smul.addr %s669, 8
        %s671 = scalar_lea.vmem [#allocation2], %s670
        %s672 = sand.u32 %s151, 1
        %s673 = scalar_lea.sflag [#allocation5], %s672
        %s674 = sand.u32 %s151, 1
        %s675 = smul.addr %s674, 8
        %s676 = scalar_lea.vmem [#allocation4], %s675
        // Predicated region
        $region37: #{coattn.1} parent=35 // pred_check
          %p677 = pneg %p135
        $region38: #{coattn.1} parent=35 // pred_check_branch
          %679 = sbr.rel (%p677) target = $region40
        $region39: #{coattn.1} parent=35 // pred_region
          %s681 = ssub.s32 128, 128
          %682 = vsyncadd %s668, %s681
          %s683 = smul.addr %s23, 128
          %s684 = scalar_lea.hbm %s4, %s683
          %s686 = sshll.u32 %s671, 4
          %s687 = int_to_ptr.vmem [resolvable:$true] %s686
          %689 = dma.vmem_to_hbm [thread:$0]  %s687, 128, %s684, %s668
        $region40: #{coattn.1} parent=35 // pred_fallthru
          _
        // Predicated region
        $region41: #{coattn.1} parent=35 // pred_check
          %p690 = pneg %p161
        $region42: #{coattn.1} parent=35 // pred_check_branch
          %692 = sbr.rel (%p690) target = $region44
        $region43: #{coattn.1} parent=35 // pred_region
          %s694 = ssub.s32 128, 128
          %695 = vsyncadd %s673, %s694
          %s696 = smul.addr %s23, 128
          %s697 = scalar_lea.hbm %s5, %s696
          %s699 = sshll.u32 %s676, 4
          %s700 = int_to_ptr.vmem [resolvable:$true] %s699
          %702 = dma.vmem_to_hbm [thread:$0]  %s700, 128, %s697, %s673
        $region44: #{coattn.1} parent=35 // pred_fallthru
          _
      $region36: #{coattn.1} parent=5 // pred_fallthru
        _
      %p703 = scmp.le.s32.totalorder 2, %s18
      // Predicated region
      $region45: #{coattn.1} parent=5 // pred_check
        %p704 = pneg %p703
      $region46: #{coattn.1} parent=5 // pred_check_branch
        %706 = sbr.rel (%p704) target = $region48
      $region47: #{coattn.1} parent=5 // pred_region
        %s707 = ssub.s32 %s18, 2
        // Predicated region
        $region49: #{coattn.1} parent=47 // pred_check
          %p708 = pneg %p141
        $region50: #{coattn.1} parent=47 // pred_check_branch
          %710 = sbr.rel (%p708) target = $region52
        $region51: #{coattn.1} parent=47 // pred_region
          %s711 = sand.u32 %s126, 1
          %s712 = scalar_lea.sflag [#allocation3], %s711
          %s713 = sand.u32 %s126, 1
          %s714 = smul.addr %s713, 8
          %s715 = scalar_lea.vmem [#allocation2], %s714
          %716 = dma.done %s712, 128
        $region52: #{coattn.1} parent=47 // pred_fallthru
          _
        // Predicated region
        $region53: #{coattn.1} parent=47 // pred_check
          %p717 = pneg %p167
        $region54: #{coattn.1} parent=47 // pred_check_branch
          %719 = sbr.rel (%p717) target = $region56
        $region55: #{coattn.1} parent=47 // pred_region
          %s720 = sand.u32 %s152, 1
          %s721 = scalar_lea.sflag [#allocation5], %s720
          %s722 = sand.u32 %s152, 1
          %s723 = smul.addr %s722, 8
          %s724 = scalar_lea.vmem [#allocation4], %s723
          %725 = dma.done %s721, 128
        $region56: #{coattn.1} parent=47 // pred_fallthru
          _
      $region48: #{coattn.1} parent=5 // pred_fallthru
        _
    $region6: #{coattn.1} parent=1 // loop_footer
      %s22 = sadd.s32 1, %s18
    $region7: #{coattn.1} parent=1 // loop_footer_branch
      %17 = sbr.rel target = $region3
    $region8: #{coattn.1} parent=1 // loop_exit
      _
    %726 = vsyncpa [#allocation3], 1
    %s727 = scalar_lea.sflag [#allocation3], 1
    %728 = vsyncpa %s727, 1
    %729 = vsyncpa [#allocation5], 1
    %s730 = scalar_lea.sflag [#allocation5], 1
    %731 = vsyncpa %s730, 1

</llo_original>
